<compile_context>
chip_gen: v7x
topology: tpu7x:2x2x1
jax: 0.10.0
libtpu: 0.0.40
codegen_flags: <defaults>
</compile_context>

<pallas_src>
import numpy as np
import jax
import jax.numpy as jnp
from jax import lax
from jax.experimental import pallas as pl
from jax.experimental.pallas import tpu as pltpu


def _round_up(x, m):
    return (x + m - 1) // m * m


def _transform_kernel(coef_ref, pts_ref, out_ref):
    """One (TR, L) tile of interleaved [x0, y0, x1, y1, ...] points.

    coef_ref : VMEM (TR, 4)  per-row [tx, ty, cos, sin]
    pts_ref  : VMEM (TR, L)  interleaved points
    out_ref  : VMEM (TR, L)  transformed points (same interleaving)
    """
    p = pts_ref[...]
    tr, lanes = p.shape

    lane_idx = lax.broadcasted_iota(jnp.int32, (tr, lanes), 1)
    is_x = (lane_idx & 1) == 0            # even lanes hold x, odd lanes hold y

    tx = coef_ref[:, 0:1]                 # (TR, 1) — broadcast along lanes
    ty = coef_ref[:, 1:2]
    c = coef_ref[:, 2:3]
    s = coef_ref[:, 3:4]

    # Subtract the per-shape translation (x lanes get tx, y lanes get ty).
    p = p - jnp.where(is_x, tx, ty)

    # Pairwise x<->y swap: even lane i needs p[i+1], odd lane i needs p[i-1].
    # Two static lane rotations (XLU slot, overlaps VPU) + a parity select.
    partner = jnp.where(is_x,
                        pltpu.roll(p, lanes - 1, axis=1),   # p[(i+1) % L]
                        pltpu.roll(p, 1, axis=1))           # p[(i-1) % L]

    # out_x = cos*px - sin*py ; out_y = sin*px + cos*py   (single full store)
    s_signed = jnp.where(is_x, -s, s)
    out_ref[...] = c * p + s_signed * partner


def transform_points_pallas(points, translation, rotation,
                            *, target_block_bytes=2 * 1024 * 1024):
    """points: [B, S, P, D] float32 (native PyTorch layout, D == 2).
    translation: [1, S, D], rotation: [1, S, 1].
    Returns transformed points [B, S, P, D]."""
    B, S, P, D = points.shape
    assert D == 2, "only num_dimensions == 2 is implemented"

    rows = B * S
    L = P * D

    # Per-shape coefficients (tiny parameter-setup glue), one row per (b, s).
    ang = rotation[0, :, 0].astype(jnp.float32)                    # [S]
    coef_s = jnp.stack(
        [translation[0, :, 0].astype(jnp.float32),
         translation[0, :, 1].astype(jnp.float32),
         jnp.cos(ang), jnp.sin(ang)], axis=-1)                     # [S, 4]
    coef = jnp.broadcast_to(coef_s[None], (B, S, 4)).reshape(rows, 4)

    # Native layout: [B, S, P, D] -> [B*S, P*D] is a free, contiguous reshape.
    pts = points.astype(jnp.float32).reshape(rows, L)

    # Lane dim padded to a multiple of 128; rows padded to a multiple of the
    # row tile (row tile is a multiple of 8, targeting ~2 MiB per block DMA).
    L_pad = _round_up(L, 128)
    rows_cap = max(8, (target_block_bytes // (L_pad * 4)) // 8 * 8)
    tr = min(rows_cap, _round_up(rows, 8))
    rows_pad = _round_up(rows, tr)
    if (rows_pad, L_pad) != (rows, L):
        pts = jnp.pad(pts, ((0, rows_pad - rows), (0, L_pad - L)))
        coef = jnp.pad(coef, ((0, rows_pad - rows), (0, 0)))

    nblocks = rows_pad // tr

    out = pl.pallas_call(
        _transform_kernel,
        out_shape=jax.ShapeDtypeStruct((rows_pad, L_pad), jnp.float32),
        grid=(nblocks,),
        in_specs=[
            pl.BlockSpec((tr, 4), lambda r: (r, 0)),       # per-row coefficients
            pl.BlockSpec((tr, L_pad), lambda r: (r, 0)),   # points tile
        ],
        out_specs=pl.BlockSpec((tr, L_pad), lambda r: (r, 0)),
        compiler_params=pltpu.CompilerParams(
            dimension_semantics=("parallel",)),
        cost_estimate=pl.CostEstimate(
            flops=4 * rows_pad * L_pad,
            transcendentals=0,
            bytes_accessed=(2 * rows_pad * L_pad + 4 * rows_pad) * 4),
    )(coef, pts)

    return out[:rows, :L].reshape(B, S, P, D)


class ShapeEvaluatorPallas:
    """JAX/Pallas port of ShapeEvaluator (2-D)."""

    def __init__(self, num_parameters, num_of_shapes, num_dimensions, key):
        assert num_dimensions == 2
        num_rotation_parameters = 1
        self.num_of_shapes = num_of_shapes
        self.num_parameters = num_parameters
        self.num_dimensions = num_dimensions
        self.num_all_parameters = num_parameters + num_dimensions + num_rotation_parameters

        k1, k2, k3 = jax.random.split(key, 3)
        # Deterministic parameter init (same shapes as the PyTorch module).
        self.shape_params = 0.1 * jax.random.normal(
            k1, (1, num_of_shapes, num_parameters), jnp.float32)
        self.translation = 0.5 * jax.random.normal(
            k2, (1, num_of_shapes, num_dimensions), jnp.float32)
        rot = 0.3 * jax.random.normal(
            k3, (1, num_of_shapes, num_rotation_parameters), jnp.float32)
        self.rotation = rot.at[..., 0].add(1.0)  # mirrors rotation[..., 0] = 1 bias

        self._translation_vector_prediction = None
        self._rotation_vector_prediction = None
        self._last_parameters = None

    def forward(self, points):
        self._last_parameters = self.shape_params
        self._translation_vector_prediction = self.translation
        self._rotation_vector_prediction = self.rotation
        points = transform_points_pallas(points, self.translation, self.rotation)
        # evaluate_points is abstract in the reference; return transformed points.
        return points


def transform_points_ref(points, translation, rotation):
    """Pure-JAX reference replicating the PyTorch 2-D transform_points math."""
    ang = rotation[..., 0]                      # [1, S]
    c, s = jnp.cos(ang), jnp.sin(ang)
    row0 = jnp.stack([c, s], axis=-1)           # [1, S, 2]
    row1 = jnp.stack([-s, c], axis=-1)          # [1, S, 2]
    R = jnp.stack([row0, row1], axis=-2)        # [1, S, 2, 2]
    Rm = R[:, :, None]                          # [1, S, 1, 2, 2]
    p = points - translation[:, :, None, :]     # [B, S, P, 2]
    return (Rm * p[..., None]).sum(axis=-2)     # [B, S, P, 2]


if __name__ == "__main__":
    key = jax.random.PRNGKey(0)
    k_points, k_model = jax.random.split(key)

    B, S, P, D = 2, 4, 256, 2
    num_parameters = 5

    model = ShapeEvaluatorPallas(num_parameters, S, D, k_model)
    points = jax.random.normal(k_points, (B, S, P, D), jnp.float32)

    out = model.forward(points)
    out = jax.block_until_ready(out)

    ref = transform_points_ref(points, model.translation, model.rotation)
    np.testing.assert_allclose(np.asarray(out), np.asarray(ref), rtol=1e-5, atol=1e-5)

    print("KERNEL_OK")
</pallas_src>

<mosaic_0001>
module attributes {stable_mosaic.version = 11 : i64} {
  func.func @_transform_kernel(%arg0: i32, %arg1: memref<8x4xf32, #tpu.memory_space<vmem>>, %arg2: memref<8x512xf32, #tpu.memory_space<vmem>>, %arg3: memref<8x512xf32, #tpu.memory_space<vmem>>) attributes {dimension_semantics = [#tpu.dimension_semantics<parallel>], iteration_bounds = array<i64: 1>, scalar_prefetch = 0 : i64, scratch_operands = 0 : i64, tpu.core_type = #tpu.core_type<tc>, window_params = [{transform_indices = @transform_0, window_bounds = array<i64: 8, 4>}, {transform_indices = @transform_1, window_bounds = array<i64: 8, 512>}, {transform_indices = @transform_2, window_bounds = array<i64: 8, 512>}]} {
    %c0 = arith.constant 0 : index
    %c0_0 = arith.constant 0 : index
    %0 = vector.load %arg2[%c0, %c0_0] : memref<8x512xf32, #tpu.memory_space<vmem>>, vector<8x512xf32>
    %1 = tpu.iota {dimensions = array<i32: 1>} : vector<8x512xi32>
    %c1_i32 = arith.constant 1 : i32
    %2 = vector.broadcast %c1_i32 : i32 to vector<8x512xi32>
    %3 = arith.andi %1, %2 : vector<8x512xi32>
    %c0_i32 = arith.constant 0 : i32
    %4 = vector.broadcast %c0_i32 : i32 to vector<8x512xi32>
    %5 = arith.cmpi eq, %3, %4 : vector<8x512xi32>
    %c0_1 = arith.constant 0 : index
    %c0_2 = arith.constant 0 : index
    %6 = vector.load %arg1[%c0_1, %c0_2] : memref<8x4xf32, #tpu.memory_space<vmem>>, vector<8x1xf32>
    %c0_3 = arith.constant 0 : index
    %c1 = arith.constant 1 : index
    %7 = vector.load %arg1[%c0_3, %c1] : memref<8x4xf32, #tpu.memory_space<vmem>>, vector<8x1xf32>
    %c0_4 = arith.constant 0 : index
    %c2 = arith.constant 2 : index
    %8 = vector.load %arg1[%c0_4, %c2] : memref<8x4xf32, #tpu.memory_space<vmem>>, vector<8x1xf32>
    %c0_5 = arith.constant 0 : index
    %c3 = arith.constant 3 : index
    %9 = vector.load %arg1[%c0_5, %c3] : memref<8x4xf32, #tpu.memory_space<vmem>>, vector<8x1xf32>
    %10 = vector.shape_cast %6 : vector<8x1xf32> to vector<8x1xf32>
    %11 = vector.broadcast %10 : vector<8x1xf32> to vector<8x512xf32>
    %12 = vector.shape_cast %7 : vector<8x1xf32> to vector<8x1xf32>
    %13 = vector.broadcast %12 : vector<8x1xf32> to vector<8x512xf32>
    %14 = arith.select %5, %11, %13 : vector<8x512xi1>, vector<8x512xf32>
    %15 = arith.subf %0, %14 : vector<8x512xf32>
    %c511_i32 = arith.constant 511 : i32
    %16 = tpu.dynamic_rotate %15 by %c511_i32 dim 1 : vector<8x512xf32>, i32 -> vector<8x512xf32>
    %c1_i32_6 = arith.constant 1 : i32
    %17 = tpu.dynamic_rotate %15 by %c1_i32_6 dim 1 : vector<8x512xf32>, i32 -> vector<8x512xf32>
    %18 = arith.select %5, %16, %17 : vector<8x512xi1>, vector<8x512xf32>
    %cst = arith.constant 0.000000e+00 : f32
    %19 = vector.broadcast %cst : f32 to vector<8x1xf32>
    %20 = arith.subf %19, %9 : vector<8x1xf32>
    %21 = vector.shape_cast %20 : vector<8x1xf32> to vector<8x1xf32>
    %22 = vector.broadcast %21 : vector<8x1xf32> to vector<8x512xf32>
    %23 = vector.shape_cast %9 : vector<8x1xf32> to vector<8x1xf32>
    %24 = vector.broadcast %23 : vector<8x1xf32> to vector<8x512xf32>
    %25 = arith.select %5, %22, %24 : vector<8x512xi1>, vector<8x512xf32>
    %26 = vector.broadcast %8 : vector<8x1xf32> to vector<8x512xf32>
    %27 = arith.mulf %26, %15 : vector<8x512xf32>
    %28 = arith.mulf %25, %18 : vector<8x512xf32>
    %29 = arith.addf %27, %28 : vector<8x512xf32>
    %c0_7 = arith.constant 0 : index
    %c0_8 = arith.constant 0 : index
    %30 = vector.load %arg3[%c0_7, %c0_8] : memref<8x512xf32, #tpu.memory_space<vmem>>, vector<8x512xf32>
    tpu.vector_store %arg3[%c0_7, %c0_8], %29 {strides = array<i32>} : memref<8x512xf32, #tpu.memory_space<vmem>>, vector<8x512xf32>,
    return
  }
  func.func @transform_0(%arg0: i32) -> (i32, i32) {
    %c0_i32 = arith.constant 0 : i32
    %c0_i32_0 = arith.constant 0 : i32
    return %arg0, %c0_i32 : i32, i32
  }
  func.func @transform_1(%arg0: i32) -> (i32, i32) {
    %c0_i32 = arith.constant 0 : i32
    %c0_i32_0 = arith.constant 0 : i32
    return %arg0, %c0_i32 : i32, i32
  }
  func.func @transform_2(%arg0: i32) -> (i32, i32) {
    %c0_i32 = arith.constant 0 : i32
    %c0_i32_0 = arith.constant 0 : i32
    return %arg0, %c0_i32 : i32, i32
  }
}

</mosaic_0001>

<llo_original>
// kernel: tpu_custom_call.1
$region0: #{tpu_custom_call.1}
  #allocation0 [shape = 'u32[]', space=smem, size = 0x4, offset = 0x4, fixed_abs, tag = 'smem constant byte address 0x4 - core index']
  #allocation1 [shape = 'u32[144,128]{1,0:T(1,128)}', space=vmem, size = 0x12000, scoped, tag = 'internal scratch']
  %s0 = inlined_call_operand.vmem [shape: f32[8,4], index: 0, kind: input, shape index: {}]
  %s1 = inlined_call_operand.hbm [shape: f32[8,512], index: 1, kind: input, shape index: {}]
  %s2 = inlined_call_operand.hbm [shape: f32[8,512], index: 2, kind: output, shape index: {}]
  %s3 = sld [smem:[#allocation0]]
  $region22: #{tpu_custom_call.1} parent=0
    _
  %s5 = ssub.s32 1, %s3
  %s6 = scalar_select 0, %s5, %s3
  $region1: #{tpu_custom_call.1} parent=0
    #allocation2 [shape = 'u8[16384]{0}', space=vmem, size = 0x4000, scoped, tag = 'input window, operand 1, single buffered']
    #allocation3 [shape = 's32[1]{0}', space=sflag, size = 0x4, scoped, tag = 'scoped memory for tpu_custom_call.1']
    #allocation4 [shape = 's32[1]{0}', space=sflag, size = 0x4, scoped, tag = 'scoped memory for tpu_custom_call.1']
    #allocation5 [shape = 'u8[16384]{0}', space=vmem, size = 0x4000, scoped, tag = 'output window, operand 0, single buffered']
    %7 = vsyncpa [#allocation3], 0
    %8 = vsyncpa [#allocation4], 0
    // Predicated region
    $region2: #{tpu_custom_call.1} parent=1 // pred_check
      _
    $region3: #{tpu_custom_call.1} parent=1 // pred_check_branch
      %10 = sbr.rel (0) target = $region5
    $region4: #{tpu_custom_call.1} parent=1 // pred_region
      _
    $region5: #{tpu_custom_call.1} parent=1 // pred_fallthru
      _
    // Predicated region
    $region6: #{tpu_custom_call.1} parent=1 // pred_check
      _
    $region7: #{tpu_custom_call.1} parent=1 // pred_check_branch
      %12 = sbr.rel (0) target = $region9
    $region8: #{tpu_custom_call.1} parent=1 // pred_region
      %s14 = ssub.s32 512, 512
      %15 = vsyncadd [#allocation3], %s14
      %s17 = sshll.u32 [#allocation2], 4
      %s18 = int_to_ptr.vmem [resolvable:$true] %s17
      %20 = dma.hbm_to_vmem [thread:$0]  %s1, 512, %s18, [#allocation3]
    $region9: #{tpu_custom_call.1} parent=1 // pred_fallthru
      _
    // Predicated region
    $region10: #{tpu_custom_call.1} parent=1 // pred_check
      _
    $region11: #{tpu_custom_call.1} parent=1 // pred_check_branch
      %22 = sbr.rel (0) target = $region13
    $region12: #{tpu_custom_call.1} parent=1 // pred_region
      %23 = dma.done [#allocation3], 512
    $region13: #{tpu_custom_call.1} parent=1 // pred_fallthru
      _
    %v24 = vld [vmem:[#allocation2] sm:$0xff]
    %v25 = vld [vmem:[#allocation2 + $0x8] sm:$0xff]
    %v26 = vld [vmem:[#allocation2 + $0x10] sm:$0xff]
    %v27 = vld [vmem:[#allocation2 + $0x18] sm:$0xff]
    %v28 = vlaneseq
    %v29 = vand.u32 %v28, 127
    %v30 = vadd.s32 %v29, 128
    %v31 = vadd.s32 %v29, 256
    %v32 = vadd.s32 %v29, 384
    %v33 = vand.u32 %v29, 1
    %v34 = vand.u32 %v30, 1
    %v35 = vand.u32 %v31, 1
    %v36 = vand.u32 %v32, 1
    %vm37 = vcmp.eq.s32.totalorder %v33, 0
    %vm38 = vcmp.eq.s32.totalorder %v34, 0
    %vm39 = vcmp.eq.s32.totalorder %v35, 0
    %vm40 = vcmp.eq.s32.totalorder %v36, 0
    %v41 = vld [vmem:[%s0] sm:$0xff]
    %43 = vset.pattern.permute.xlu0 0
    %44 = vperm.xlu0 %43, %v41
    %v45 = vpop.permute.xlu0 %44
    %47 = vset.pattern.permute.xlu0 1
    %48 = vperm.xlu0 %47, %v41
    %v49 = vpop.permute.xlu0 %48
    %v51 = vsel %vm37, %v45, %v49
    %v52 = vsel %vm38, %v45, %v49
    %v53 = vsel %vm39, %v45, %v49
    %v54 = vsel %vm40, %v45, %v49
    %v55 = vsub.f32 %v24, %v51
    %v56 = vsub.f32 %v25, %v52
    %v57 = vsub.f32 %v26, %v53
    %v58 = vsub.f32 %v27, %v54
    %59 = vrot.lane.b32.xlu0 %v55, 127
    %v60 = vpop.permute.xlu0 %59
    %61 = vrot.lane.b32.xlu0 %v56, 127
    %v62 = vpop.permute.xlu0 %61
    %63 = vrot.lane.b32.xlu0 %v57, 127
    %v64 = vpop.permute.xlu0 %63
    %65 = vrot.lane.b32.xlu0 %v58, 127
    %v66 = vpop.permute.xlu0 %65
    %vm67 = vcmp.lt.s32.totalorder %v29, 127
    %v68 = vsel %vm67, %v64, %v66
    %v69 = vsel %vm67, %v62, %v64
    %v70 = vsel %vm67, %v60, %v62
    %v71 = vsel %vm67, %v66, %v60
    %72 = vrot.lane.b32.xlu0 %v55, 1
    %v73 = vpop.permute.xlu0 %72
    %74 = vrot.lane.b32.xlu0 %v56, 1
    %v75 = vpop.permute.xlu0 %74
    %76 = vrot.lane.b32.xlu0 %v57, 1
    %v77 = vpop.permute.xlu0 %76
    %78 = vrot.lane.b32.xlu0 %v58, 1
    %v79 = vpop.permute.xlu0 %78
    %vm80 = vcmp.lt.s32.totalorder %v29, 1
    %v81 = vsel %vm80, %v77, %v79
    %v82 = vsel %vm80, %v75, %v77
    %v83 = vsel %vm80, %v73, %v75
    %v84 = vsel %vm80, %v79, %v73
    %v85 = vsel %vm37, %v70, %v84
    %v86 = vsel %vm38, %v69, %v83
    %v87 = vsel %vm39, %v68, %v82
    %v88 = vsel %vm40, %v71, %v81
    %v89 = vsub.f32 0.0, %v41
    %91 = vset.pattern.permute.xlu0 3
    %92 = vperm.xlu0 %91, %v89
    %v93 = vpop.permute.xlu0 %92
    %95 = vset.pattern.permute.xlu0 3
    %96 = vperm.xlu0 %95, %v41
    %v97 = vpop.permute.xlu0 %96
    %v99 = vsel %vm37, %v93, %v97
    %v100 = vsel %vm38, %v93, %v97
    %v101 = vsel %vm39, %v93, %v97
    %v102 = vsel %vm40, %v93, %v97
    %103 = vset.pattern.permute.xlu0 2
    %104 = vperm.xlu0 %103, %v41
    %v105 = vpop.permute.xlu0 %104
    %v107 = vmul.f32 %v105, %v55
    %v108 = vmul.f32 %v105, %v56
    %v109 = vmul.f32 %v105, %v57
    %v110 = vmul.f32 %v105, %v58
    %v111 = vmul.f32 %v99, %v85
    %v112 = vmul.f32 %v100, %v86
    %v113 = vmul.f32 %v101, %v87
    %v114 = vmul.f32 %v102, %v88
    %v115 = vadd.f32 %v107, %v111
    %v116 = vadd.f32 %v108, %v112
    %v117 = vadd.f32 %v109, %v113
    %v118 = vadd.f32 %v110, %v114
    %119 = vst [vmem:[#allocation5] sm:$0xff] %v115
    %120 = vst [vmem:[#allocation5 + $0x8] sm:$0xff] %v116
    %121 = vst [vmem:[#allocation5 + $0x10] sm:$0xff] %v117
    %122 = vst [vmem:[#allocation5 + $0x18] sm:$0xff] %v118
    // Predicated region
    $region14: #{tpu_custom_call.1} parent=1 // pred_check
      _
    $region15: #{tpu_custom_call.1} parent=1 // pred_check_branch
      %124 = sbr.rel (0) target = $region17
    $region16: #{tpu_custom_call.1} parent=1 // pred_region
      %s126 = ssub.s32 512, 512
      %127 = vsyncadd [#allocation4], %s126
      %s129 = sshll.u32 [#allocation5], 4
      %s130 = int_to_ptr.vmem [resolvable:$true] %s129
      %132 = dma.vmem_to_hbm [thread:$0]  %s130, 512, %s2, [#allocation4]
    $region17: #{tpu_custom_call.1} parent=1 // pred_fallthru
      _
    // Predicated region
    $region18: #{tpu_custom_call.1} parent=1 // pred_check
      _
    $region19: #{tpu_custom_call.1} parent=1 // pred_check_branch
      %134 = sbr.rel (0) target = $region21
    $region20: #{tpu_custom_call.1} parent=1 // pred_region
      %135 = dma.done [#allocation4], 512
    $region21: #{tpu_custom_call.1} parent=1 // pred_fallthru
      _
    %136 = vsyncpa [#allocation3], 1
    %137 = vsyncpa [#allocation4], 1

</llo_original>
